<compile_context>
chip_gen: v7x
topology: tpu7x:2x2x1
jax: 0.10.0
libtpu: 0.0.40
codegen_flags: <defaults>
</compile_context>

<pallas_src>
import functools

import jax
import jax.numpy as jnp
from jax.experimental import pallas as pl
from jax.experimental.pallas import tpu as pltpu


def _round_up(x, m):
    return ((x + m - 1) // m) * m


# Large-batch tile (sweepable: 4096 / 8192 / 16384).  At 8192 the VMEM
# footprint (double-buffered x/out + f32 intermediates) is ~8 MiB -> safe on
# v5e / v6e / v7x with the explicit 32 MiB scoped limit below.
_BIG_TILE = 8192
_VMEM_LIMIT_BYTES = 32 * 1024 * 1024


def _pick_tile(n):
    """Batch-tile selection.

    * Small batches (inference / unit tests): one grid step, rounded up to 8.
    * Large batches (self-play): big tiles, but always >= 2 grid steps so
      dimension_semantics=("parallel",) can shard the batch across both
      v7x TensorCores.
    """
    if n <= 1024:
        return _round_up(max(n, 8), 8)
    return min(_BIG_TILE, _round_up((n + 1) // 2, 8))


# ---------------------------------------------------------------------------
# Pallas kernel: x(N,18) -> h1(N,64) -> h2(N,16) -> fused heads (N,16)
#   out[:, 0:9]  = softmax(policy logits)
#   out[:, 9:10] = value
# ---------------------------------------------------------------------------
def _fused_net_kernel(x_ref, w_ref, b_ref, out_ref):
    x = x_ref[...]                                   # (TILE_N, 18)
    wdt = w_ref.dtype

    # Static, tile-aligned slices of the packed parameter slabs (no extra DMAs).
    w1 = w_ref[0:18, :]                              # (18, 64)  conv1 (folded BN1)
    w2 = w_ref[24:88, 0:16]                          # (64, 16)  conv2 (folded BN2)
    wh = w_ref[88:104, 0:16]                         # (16, 16)  [policy | value | 0-pad]
    b1 = b_ref[0:1, :]                               # (1, 64)
    b2 = b_ref[1:2, 0:16]                            # (1, 16)
    bh = b_ref[2:3, 0:16]                            # (1, 16)

    # conv1 (3x3 over 3x3 board == dense) + folded BN1 + ReLU
    h1 = jnp.maximum(jnp.dot(x, w1, preferred_element_type=jnp.float32) + b1, 0.0)
    # conv2 (1x1 == dense) + folded BN2 + ReLU
    h2 = jnp.maximum(
        jnp.dot(h1.astype(wdt), w2, preferred_element_type=jnp.float32) + b2, 0.0)
    # fused policy|value head: single MXU dot, single lane-dense store.
    hh = jnp.dot(h2.astype(wdt), wh, preferred_element_type=jnp.float32) + bh  # (TILE_N, 16)

    # Masked softmax over the 9 policy columns only; value column passes through.
    col = jax.lax.broadcasted_iota(jnp.int32, hh.shape, 1)
    is_policy = col < 9
    m = jnp.max(jnp.where(is_policy, hh, -jnp.inf), axis=-1, keepdims=True)
    e = jnp.where(is_policy, jnp.exp(hh - m), 0.0)
    inv = pl.reciprocal(jnp.sum(e, axis=-1, keepdims=True), approx=False)
    out_ref[...] = jnp.where(is_policy, e * inv, hh).astype(out_ref.dtype)


# ---------------------------------------------------------------------------
# One-time parameter folding & packing (hoisted out of the per-call path).
# ---------------------------------------------------------------------------
def fold_params(params, *, eps=1e-5, compute_dtype=jnp.float32):
    # Fold BatchNorm (eval mode) into the preceding conv.
    s1 = params["bn1_gamma"] / jnp.sqrt(params["bn1_var"] + eps)                 # (64,)
    w1 = (params["conv1_w"].reshape(64, 18) * s1[:, None]).T                     # (18, 64)
    b1 = (params["conv1_b"] - params["bn1_mean"]) * s1 + params["bn1_beta"]      # (64,)

    s2 = params["bn2_gamma"] / jnp.sqrt(params["bn2_var"] + eps)                 # (16,)
    w2 = (params["conv2_w"].reshape(16, 64) * s2[:, None]).T                     # (64, 16)
    b2 = (params["conv2_b"] - params["bn2_mean"]) * s2 + params["bn2_beta"]      # (16,)

    # Fused head: [policy (16,9) | value (16,1) | zero pad (16,6)] -> (16,16)
    wh = jnp.concatenate(
        [params["policy_w"].T, params["value_w"].T, jnp.zeros((16, 6), jnp.float32)],
        axis=1)
    bh = jnp.concatenate(
        [params["policy_b"], params["value_b"], jnp.zeros((6,), jnp.float32)], axis=0)

    # Weight slab; section starts (0, 24, 88) are multiples of 8 -> aligned slices.
    wslab = jnp.zeros((104, 64), jnp.float32)
    wslab = wslab.at[0:18, 0:64].set(w1)
    wslab = wslab.at[24:88, 0:16].set(w2)
    wslab = wslab.at[88:104, 0:16].set(wh)
    wslab = wslab.astype(compute_dtype)

    # Bias slab (stays f32: added to the f32 accumulators).
    bslab = jnp.zeros((3, 64), jnp.float32)
    bslab = bslab.at[0, 0:64].set(b1)
    bslab = bslab.at[1, 0:16].set(b2)
    bslab = bslab.at[2, 0:16].set(bh)

    return wslab, bslab


# ---------------------------------------------------------------------------
# Forward wrapper: batch-tiled pallas_call over the packed slabs.
# ---------------------------------------------------------------------------
@functools.partial(jax.jit, static_argnames=("out_dtype",))
def tictactoe_forward(x_nchw, wslab, bslab, out_dtype=jnp.float32):
    N = x_nchw.shape[0]
    x_flat = x_nchw.reshape(N, -1).astype(wslab.dtype)          # (N, 18), im2col order

    tile_n = _pick_tile(N)
    grid = (pl.cdiv(N, tile_n),)

    head = pl.pallas_call(
        _fused_net_kernel,
        grid=grid,
        in_specs=[
            pl.BlockSpec((tile_n, 18), lambda i: (i, 0)),        # x: tiled over batch
            pl.BlockSpec(wslab.shape, lambda i: (0, 0)),         # weights: VMEM-resident
            pl.BlockSpec(bslab.shape, lambda i: (0, 0)),         # biases: VMEM-resident
        ],
        out_specs=pl.BlockSpec((tile_n, 16), lambda i: (i, 0)),  # fused policy|value
        out_shape=jax.ShapeDtypeStruct((N, 16), out_dtype),
        compiler_params=pltpu.CompilerParams(
            dimension_semantics=("parallel",),                   # megacore on v7x
            vmem_limit_bytes=_VMEM_LIMIT_BYTES),
    )(x_flat, wslab, bslab)

    policy = head[:, 0:9]
    value = head[:, 9:10]
    # PyTorch `.squeeze()` on the policy output (no-op for N > 1).
    return jnp.squeeze(policy), value


# ---------------------------------------------------------------------------
# Deterministic parameter construction + pure-JAX reference check
# ---------------------------------------------------------------------------
def make_params(key):
    ks = jax.random.split(key, 12)
    p = {
        "conv1_w": 0.1 * jax.random.normal(ks[0], (64, 2, 3, 3), jnp.float32),
        "conv1_b": 0.1 * jax.random.normal(ks[1], (64,), jnp.float32),
        "bn1_gamma": 1.0 + 0.1 * jax.random.normal(ks[2], (64,), jnp.float32),
        "bn1_beta": 0.1 * jax.random.normal(ks[3], (64,), jnp.float32),
        "bn1_mean": 0.05 * jax.random.normal(ks[4], (64,), jnp.float32),
        "bn1_var": jax.random.uniform(ks[5], (64,), jnp.float32, 0.5, 1.5),
        "conv2_w": 0.1 * jax.random.normal(ks[6], (16, 64, 1, 1), jnp.float32),
        "conv2_b": 0.1 * jax.random.normal(ks[7], (16,), jnp.float32),
        "bn2_gamma": 1.0 + 0.1 * jax.random.normal(ks[8], (16,), jnp.float32),
        "bn2_beta": 0.1 * jax.random.normal(ks[9], (16,), jnp.float32),
        "bn2_mean": 0.05 * jax.random.normal(ks[10], (16,), jnp.float32),
        "bn2_var": jax.random.uniform(ks[11], (16,), jnp.float32, 0.5, 1.5),
    }
    kh = jax.random.split(jax.random.fold_in(key, 99), 4)
    p["policy_w"] = 0.2 * jax.random.normal(kh[0], (9, 16), jnp.float32)
    p["policy_b"] = 0.1 * jax.random.normal(kh[1], (9,), jnp.float32)
    p["value_w"] = 0.2 * jax.random.normal(kh[2], (1, 16), jnp.float32)
    p["value_b"] = 0.1 * jax.random.normal(kh[3], (1,), jnp.float32)
    return p


def reference_forward(x_nchw, params, eps=1e-5):
    N = x_nchw.shape[0]
    x = x_nchw.reshape(N, -1)
    s1 = params["bn1_gamma"] / jnp.sqrt(params["bn1_var"] + eps)
    h1 = x @ (params["conv1_w"].reshape(64, 18) * s1[:, None]).T
    h1 = jnp.maximum(h1 + (params["conv1_b"] - params["bn1_mean"]) * s1 + params["bn1_beta"], 0.0)
    s2 = params["bn2_gamma"] / jnp.sqrt(params["bn2_var"] + eps)
    h2 = h1 @ (params["conv2_w"].reshape(16, 64) * s2[:, None]).T
    h2 = jnp.maximum(h2 + (params["conv2_b"] - params["bn2_mean"]) * s2 + params["bn2_beta"], 0.0)
    logits = h2 @ params["policy_w"].T + params["policy_b"]
    policy = jax.nn.softmax(logits, axis=1)
    value = h2 @ params["value_w"].T + params["value_b"]
    return jnp.squeeze(policy), value


if __name__ == "__main__":
    key = jax.random.PRNGKey(0)
    k_x, k_p, k_big = jax.random.split(key, 3)

    params = make_params(k_p)
    # Fold/pack once per parameter set (not per forward call).
    wslab_f32, bslab_f32 = fold_params(params)                       # f32 path

    # --- 1) Small batch (module-default numerics), f32, tight tolerance. ---
    x = jax.random.uniform(k_x, (8, 2, 3, 3), jnp.float32)           # NCHW board
    policy, value = tictactoe_forward(x, wslab_f32, bslab_f32)
    jax.block_until_ready((policy, value))
    ref_policy, ref_value = reference_forward(x, params)
    assert policy.shape == (8, 9) and value.shape == (8, 1)
    assert jnp.allclose(policy, ref_policy, atol=1e-5, rtol=1e-5)
    assert jnp.allclose(value, ref_value, atol=1e-5, rtol=1e-5)

    # --- 2) Larger ragged batch exercising the 2-step "parallel" grid, f32. ---
    x_big = jax.random.uniform(k_big, (4100, 2, 3, 3), jnp.float32)
    policy_b, value_b = tictactoe_forward(x_big, wslab_f32, bslab_f32)
    jax.block_until_ready((policy_b, value_b))
    ref_policy_b, ref_value_b = reference_forward(x_big, params)
    assert policy_b.shape == (4100, 9) and value_b.shape == (4100, 1)
    assert jnp.allclose(policy_b, ref_policy_b, atol=1e-5, rtol=1e-5)
    assert jnp.allclose(value_b, ref_value_b, atol=1e-5, rtol=1e-5)

    # --- 3) bf16 I/O path for the HBM-bound self-play regime (relaxed tol). ---
    wslab_bf, bslab_bf = fold_params(params, compute_dtype=jnp.bfloat16)
    policy_h, value_h = tictactoe_forward(x_big, wslab_bf, bslab_bf,
                                          out_dtype=jnp.bfloat16)
    jax.block_until_ready((policy_h, value_h))
    assert jnp.allclose(policy_h.astype(jnp.float32), ref_policy_b, atol=3e-2, rtol=5e-2)
    assert jnp.allclose(value_h.astype(jnp.float32), ref_value_b, atol=3e-2, rtol=5e-2)

    print("KERNEL_OK")
</pallas_src>

<mosaic_0001>
module attributes {stable_mosaic.version = 11 : i64} {
  func.func @_fused_net_kernel(%arg0: i32, %arg1: memref<8x18xf32, #tpu.memory_space<vmem>>, %arg2: memref<104x64xf32, #tpu.memory_space<vmem>>, %arg3: memref<3x64xf32, #tpu.memory_space<vmem>>, %arg4: memref<8x16xf32, #tpu.memory_space<vmem>>) attributes {dimension_semantics = [#tpu.dimension_semantics<parallel>], iteration_bounds = array<i64: 1>, scalar_prefetch = 0 : i64, scratch_operands = 0 : i64, tpu.core_type = #tpu.core_type<tc>, window_params = [{transform_indices = @transform_0, window_bounds = array<i64: 8, 18>}, {pipeline_mode = #tpu.pipeline_mode<synchronous>, transform_indices = @transform_1, window_bounds = array<i64: 104, 64>}, {pipeline_mode = #tpu.pipeline_mode<synchronous>, transform_indices = @transform_2, window_bounds = array<i64: 3, 64>}, {transform_indices = @transform_3, window_bounds = array<i64: 8, 16>}]} {
    %c0 = arith.constant 0 : index
    %c0_0 = arith.constant 0 : index
    %0 = vector.load %arg1[%c0, %c0_0] : memref<8x18xf32, #tpu.memory_space<vmem>>, vector<8x18xf32>
    %c0_1 = arith.constant 0 : index
    %c0_2 = arith.constant 0 : index
    %1 = vector.load %arg2[%c0_1, %c0_2] : memref<104x64xf32, #tpu.memory_space<vmem>>, vector<18x64xf32>
    %c24 = arith.constant 24 : index
    %c0_3 = arith.constant 0 : index
    %2 = vector.load %arg2[%c24, %c0_3] : memref<104x64xf32, #tpu.memory_space<vmem>>, vector<64x16xf32>
    %c88 = arith.constant 88 : index
    %c0_4 = arith.constant 0 : index
    %3 = vector.load %arg2[%c88, %c0_4] : memref<104x64xf32, #tpu.memory_space<vmem>>, vector<16x16xf32>
    %c0_5 = arith.constant 0 : index
    %c0_6 = arith.constant 0 : index
    %4 = vector.load %arg3[%c0_5, %c0_6] : memref<3x64xf32, #tpu.memory_space<vmem>>, vector<1x64xf32>
    %c1 = arith.constant 1 : index
    %c0_7 = arith.constant 0 : index
    %5 = vector.load %arg3[%c1, %c0_7] : memref<3x64xf32, #tpu.memory_space<vmem>>, vector<1x16xf32>
    %c2 = arith.constant 2 : index
    %c0_8 = arith.constant 0 : index
    %6 = vector.load %arg3[%c2, %c0_8] : memref<3x64xf32, #tpu.memory_space<vmem>>, vector<1x16xf32>
    %cst = arith.constant dense<0.000000e+00> : vector<8x64xf32>
    %7 = tpu.matmul %0, %1, %cst {dimension_numbers = #tpu.dot_dimension_numbers<[1], [0], [0], [1], [0, 0, 1, 1], [], []>} : vector<8x18xf32>, vector<18x64xf32>, vector<8x64xf32> -> vector<8x64xf32>
    %8 = vector.broadcast %4 : vector<1x64xf32> to vector<8x64xf32>
    %9 = arith.addf %7, %8 : vector<8x64xf32>
    %cst_9 = arith.constant 0.000000e+00 : f32
    %10 = vector.broadcast %cst_9 : f32 to vector<8x64xf32>
    %11 = arith.maximumf %9, %10 : vector<8x64xf32>
    %cst_10 = arith.constant dense<0.000000e+00> : vector<8x16xf32>
    %12 = tpu.matmul %11, %2, %cst_10 {dimension_numbers = #tpu.dot_dimension_numbers<[1], [0], [0], [1], [0, 0, 1, 1], [], []>} : vector<8x64xf32>, vector<64x16xf32>, vector<8x16xf32> -> vector<8x16xf32>
    %13 = vector.broadcast %5 : vector<1x16xf32> to vector<8x16xf32>
    %14 = arith.addf %12, %13 : vector<8x16xf32>
    %cst_11 = arith.constant 0.000000e+00 : f32
    %15 = vector.broadcast %cst_11 : f32 to vector<8x16xf32>
    %16 = arith.maximumf %14, %15 : vector<8x16xf32>
    %cst_12 = arith.constant dense<0.000000e+00> : vector<8x16xf32>
    %17 = tpu.matmul %16, %3, %cst_12 {dimension_numbers = #tpu.dot_dimension_numbers<[1], [0], [0], [1], [0, 0, 1, 1], [], []>} : vector<8x16xf32>, vector<16x16xf32>, vector<8x16xf32> -> vector<8x16xf32>
    %18 = vector.broadcast %6 : vector<1x16xf32> to vector<8x16xf32>
    %19 = arith.addf %17, %18 : vector<8x16xf32>
    %20 = tpu.iota {dimensions = array<i32: 1>} : vector<8x16xi32>
    %c9_i32 = arith.constant 9 : i32
    %21 = vector.broadcast %c9_i32 : i32 to vector<8x16xi32>
    %22 = arith.cmpi slt, %20, %21 : vector<8x16xi32>
    %cst_13 = arith.constant 0xFF800000 : f32
    %23 = vector.broadcast %cst_13 : f32 to vector<8x16xf32>
    %24 = arith.select %22, %19, %23 : vector<8x16xi1>, vector<8x16xf32>
    %cst_14 = arith.constant dense<0xFF800000> : vector<8xf32>
    %25 = vector.multi_reduction <maximumf>, %24, %cst_14 [1] : vector<8x16xf32> to vector<8xf32>
    %26 = vector.shape_cast %25 : vector<8xf32> to vector<8x1xf32>
    %27 = vector.broadcast %26 : vector<8x1xf32> to vector<8x16xf32>
    %28 = arith.subf %19, %27 : vector<8x16xf32>
    %29 = math.exp %28 : vector<8x16xf32>
    %cst_15 = arith.constant 0.000000e+00 : f32
    %30 = vector.broadcast %cst_15 : f32 to vector<8x16xf32>
    %31 = arith.select %22, %29, %30 : vector<8x16xi1>, vector<8x16xf32>
    %cst_16 = arith.constant dense<0.000000e+00> : vector<8xf32>
    %32 = vector.multi_reduction <add>, %31, %cst_16 [1] : vector<8x16xf32> to vector<8xf32>
    %33 = vector.shape_cast %32 : vector<8xf32> to vector<8x1xf32>
    %34 = tpu.reciprocal %33 : vector<8x1xf32> -> vector<8x1xf32>
    %35 = vector.broadcast %34 : vector<8x1xf32> to vector<8x16xf32>
    %36 = arith.mulf %31, %35 : vector<8x16xf32>
    %37 = arith.select %22, %36, %19 : vector<8x16xi1>, vector<8x16xf32>
    %c0_17 = arith.constant 0 : index
    %c0_18 = arith.constant 0 : index
    %38 = vector.load %arg4[%c0_17, %c0_18] : memref<8x16xf32, #tpu.memory_space<vmem>>, vector<8x16xf32>
    tpu.vector_store %arg4[%c0_17, %c0_18], %37 {strides = array<i32>} : memref<8x16xf32, #tpu.memory_space<vmem>>, vector<8x16xf32>,
    return
  }
  func.func @transform_0(%arg0: i32) -> (i32, i32) {
    %c0_i32 = arith.constant 0 : i32
    %c0_i32_0 = arith.constant 0 : i32
    return %arg0, %c0_i32 : i32, i32
  }
  func.func @transform_1(%arg0: i32) -> (i32, i32) {
    %c0_i32 = arith.constant 0 : i32
    %c0_i32_0 = arith.constant 0 : i32
    %c0_i32_1 = arith.constant 0 : i32
    return %c0_i32, %c0_i32_0 : i32, i32
  }
  func.func @transform_2(%arg0: i32) -> (i32, i32) {
    %c0_i32 = arith.constant 0 : i32
    %c0_i32_0 = arith.constant 0 : i32
    %c0_i32_1 = arith.constant 0 : i32
    return %c0_i32, %c0_i32_0 : i32, i32
  }
  func.func @transform_3(%arg0: i32) -> (i32, i32) {
    %c0_i32 = arith.constant 0 : i32
    %c0_i32_0 = arith.constant 0 : i32
    return %arg0, %c0_i32 : i32, i32
  }
}

</mosaic_0001>

<llo_original>
// kernel: tictactoe_forward.1
$region0: #{tictactoe_forward.1}
  #allocation0 [shape = 'u32[]', space=smem, size = 0x4, offset = 0x4, fixed_abs, tag = 'smem constant byte address 0x4 - core index']
  #allocation1 [shape = 'u32[144,128]{1,0:T(1,128)}', space=vmem, size = 0x12000, scoped, tag = 'internal scratch']
  %s0 = inlined_call_operand.vmem [shape: f32[8,18], index: 0, kind: input, shape index: {}]
  %s1 = inlined_call_operand.vmem [shape: f32[104,64], index: 1, kind: input, shape index: {}]
  %s2 = inlined_call_operand.vmem [shape: f32[3,64], index: 2, kind: input, shape index: {}]
  %s3 = inlined_call_operand.vmem [shape: f32[8,16], index: 3, kind: output, shape index: {}]
  %s4 = sld [smem:[#allocation0]]
  $region22: #{tictactoe_forward.1} parent=0
    _
  %s6 = ssub.s32 1, %s4
  %s7 = scalar_select 0, %s6, %s4
  // Predicated region
  $region2: #{tictactoe_forward.1} parent=0 // pred_check
    _
  $region3: #{tictactoe_forward.1} parent=0 // pred_check_branch
    %9 = sbr.rel (0) target = $region5
  $region4: #{tictactoe_forward.1} parent=0 // pred_region
    _
  $region5: #{tictactoe_forward.1} parent=0 // pred_fallthru
    _
  // Predicated region
  $region6: #{tictactoe_forward.1} parent=0 // pred_check
    _
  $region7: #{tictactoe_forward.1} parent=0 // pred_check_branch
    %11 = sbr.rel (0) target = $region9
  $region8: #{tictactoe_forward.1} parent=0 // pred_region
    _
  $region9: #{tictactoe_forward.1} parent=0 // pred_fallthru
    _
  // Predicated region
  $region10: #{tictactoe_forward.1} parent=0 // pred_check
    _
  $region11: #{tictactoe_forward.1} parent=0 // pred_check_branch
    %13 = sbr.rel (0) target = $region13
  $region12: #{tictactoe_forward.1} parent=0 // pred_region
    _
  $region13: #{tictactoe_forward.1} parent=0 // pred_fallthru
    _
  %v14 = vld [vmem:[%s0] sm:$0xff]
  %v15 = vld [vmem:[%s1] sm:$0xff]
  %v16 = vld [vmem:[%s1 + $0x8] sm:$0xff]
  %v17 = vld [vmem:[%s1 + $0x10] sm:$0x3]
  %v18 = vld [vmem:[%s1 + $0x18] sm:$0xff]
  %v19 = vld [vmem:[%s1 + $0x20] sm:$0xff]
  %v20 = vld [vmem:[%s1 + $0x28] sm:$0xff]
  %v21 = vld [vmem:[%s1 + $0x30] sm:$0xff]
  %v22 = vld [vmem:[%s1 + $0x38] sm:$0xff]
  %v23 = vld [vmem:[%s1 + $0x40] sm:$0xff]
  %v24 = vld [vmem:[%s1 + $0x48] sm:$0xff]
  %v25 = vld [vmem:[%s1 + $0x50] sm:$0xff]
  %v26 = vld [vmem:[%s1 + $0x58] sm:$0xff]
  %v27 = vld [vmem:[%s1 + $0x60] sm:$0xff]
  %v28 = vld [vmem:[%s2] sm:$0x1]
  %v29 = vld [vmem:[%s2 + $0x1] sm:$0x1]
  %v30 = vld [vmem:[%s2 + $0x2] sm:$0x1]
  %v31 = vlaneseq
  %v32 = vshrl.u32 %v31, 7
  %v33 = vsub.s32 0, %v32
  %v34 = vrot.slane %v28, %v33
  %vm35 = vcmask 146432
  %v37 = vsel %vm35, %v14, 0
  %vm39 = vcmask 1041408
  %v41 = vsel %vm39, %v17, 0
  %43 = vmatprep.subr.mxu0 0.0
  %44 = vmatpush1.msra.mxu0 %v15
  %45 = vmatprep.subr.mxu0 0.0
  %46 = vmatpush1.msra.mxu0 %v16
  %47 = vmatprep.subr.mxu0 0.0
  %48 = vmatpush1.msra.mxu0 %v41
  %49 = vmatprep.subr.mxu0 0.0
  %50 = vmatpush1.msra.mxu0 0.0
  %51 = vmatprep.subr.mxu0 0.0
  %52 = vmatpush1.msra.mxu0 0.0
  %53 = vmatprep.subr.mxu0 0.0
  %54 = vmatpush1.msra.mxu0 0.0
  %55 = vmatprep.subr.mxu0 0.0
  %56 = vmatpush1.msra.mxu0 0.0
  %57 = vmatprep.subr.mxu0 0.0
  %58 = vmatpush1.msra.mxu0 0.0
  %59 = vmatprep.subr.mxu0 0.0
  %60 = vmatpush1.msra.mxu0 0.0
  %61 = vmatprep.subr.mxu0 0.0
  %62 = vmatpush1.msra.mxu0 0.0
  %63 = vmatprep.subr.mxu0 0.0
  %64 = vmatpush1.msra.mxu0 0.0
  %65 = vmatprep.subr.mxu0 0.0
  %66 = vmatpush1.msra.mxu0 0.0
  %67 = vmatprep.subr.mxu0 0.0
  %68 = vmatpush1.msra.mxu0 0.0
  %69 = vmatprep.subr.mxu0 0.0
  %70 = vmatpush1.msra.mxu0 0.0
  %71 = vmatprep.subr.mxu0 0.0
  %72 = vmatpush1.msra.mxu0 0.0
  %73 = vmatprep.subr.mxu0 0.0
  %74 = vmatpush1.msra.mxu0 0.0
  %75 = vmatprep.subr.mxu0 0.0
  %76 = vmatpush1.msra.mxu0 0.0
  %77 = vmatprep.subr.mxu0 0.0
  %78 = vmatpush1.msra.mxu0 0.0
  %79 = vmatprep.subr.mxu0 0.0
  %80 = vmatpush1.msra.mxu0 0.0
  %81 = vmatprep.subr.mxu0 0.0
  %82 = vmatpush1.msra.mxu0 0.0
  %83 = vmatprep.subr.mxu0 0.0
  %84 = vmatpush1.msra.mxu0 0.0
  %85 = vmatprep.subr.mxu0 0.0
  %86 = vmatpush1.msra.mxu0 0.0
  %87 = vmatprep.subr.mxu0 0.0
  %88 = vmatpush1.msra.mxu0 0.0
  %89 = vmatprep.subr.mxu0 0.0
  %90 = vmatpush1.msra.mxu0 0.0
  %91 = vmatprep.subr.mxu0 0.0
  %92 = vmatpush1.msra.mxu0 0.0
  %93 = vmatprep.subr.mxu0 0.0
  %94 = vmatpush1.msra.mxu0 0.0
  %95 = vmatprep.subr.mxu0 0.0
  %96 = vmatpush1.msra.mxu0 0.0
  %97 = vmatprep.subr.mxu0 0.0
  %98 = vmatpush1.msra.mxu0 0.0
  %99 = vmatprep.subr.mxu0 0.0
  %100 = vmatpush1.msra.mxu0 0.0
  %101 = vmatprep.subr.mxu0 0.0
  %102 = vmatpush1.msra.mxu0 0.0
  %103 = vmatprep.subr.mxu0 0.0
  %104 = vmatpush1.msra.mxu0 0.0
  %105 = vmatprep.subr.mxu0 0.0
  %106 = vmatpush1.msra.mxu0 0.0
  %107 = vmatprep.mubr.f32.mxu0 0.0
  %108 = vmatmul.mubr.f32.gmra.mrb[0].mxu0 %v37
  %v109 = vpop.f32.mrb[0].mxu0
  %v110 = vadd.f32 %v34, %v109
  %v111 = vpop.f32.mrb[0].mxu0
  %112 = vdwg.mxu0
  %v113 = vmax.f32 %v110, 0.0
  %v114 = vlaneseq
  %v115 = vshrl.u32 %v114, 7
  %v116 = vsub.s32 0, %v115
  %v117 = vrot.slane %v29, %v116
  %vm118 = vcmask 523264
  %v120 = vsel %vm118, %v113, 0
  %122 = vmatprep.subr.mxu0 0.0
  %123 = vmatpush1.msra.mxu0 %v18
  %124 = vmatprep.subr.mxu0 0.0
  %125 = vmatpush1.msra.mxu0 %v19
  %126 = vmatprep.subr.mxu0 0.0
  %127 = vmatpush1.msra.mxu0 %v20
  %128 = vmatprep.subr.mxu0 0.0
  %129 = vmatpush1.msra.mxu0 %v21
  %130 = vmatprep.subr.mxu0 0.0
  %131 = vmatpush1.msra.mxu0 %v22
  %132 = vmatprep.subr.mxu0 0.0
  %133 = vmatpush1.msra.mxu0 %v23
  %134 = vmatprep.subr.mxu0 0.0
  %135 = vmatpush1.msra.mxu0 %v24
  %136 = vmatprep.subr.mxu0 0.0
  %137 = vmatpush1.msra.mxu0 %v25
  %138 = vmatprep.subr.mxu0 0.0
  %139 = vmatpush1.msra.mxu0 0.0
  %140 = vmatprep.subr.mxu0 0.0
  %141 = vmatpush1.msra.mxu0 0.0
  %142 = vmatprep.subr.mxu0 0.0
  %143 = vmatpush1.msra.mxu0 0.0
  %144 = vmatprep.subr.mxu0 0.0
  %145 = vmatpush1.msra.mxu0 0.0
  %146 = vmatprep.subr.mxu0 0.0
  %147 = vmatpush1.msra.mxu0 0.0
  %148 = vmatprep.subr.mxu0 0.0
  %149 = vmatpush1.msra.mxu0 0.0
  %150 = vmatprep.subr.mxu0 0.0
  %151 = vmatpush1.msra.mxu0 0.0
  %152 = vmatprep.subr.mxu0 0.0
  %153 = vmatpush1.msra.mxu0 0.0
  %154 = vmatprep.subr.mxu0 0.0
  %155 = vmatpush1.msra.mxu0 0.0
  %156 = vmatprep.subr.mxu0 0.0
  %157 = vmatpush1.msra.mxu0 0.0
  %158 = vmatprep.subr.mxu0 0.0
  %159 = vmatpush1.msra.mxu0 0.0
  %160 = vmatprep.subr.mxu0 0.0
  %161 = vmatpush1.msra.mxu0 0.0
  %162 = vmatprep.subr.mxu0 0.0
  %163 = vmatpush1.msra.mxu0 0.0
  %164 = vmatprep.subr.mxu0 0.0
  %165 = vmatpush1.msra.mxu0 0.0
  %166 = vmatprep.subr.mxu0 0.0
  %167 = vmatpush1.msra.mxu0 0.0
  %168 = vmatprep.subr.mxu0 0.0
  %169 = vmatpush1.msra.mxu0 0.0
  %170 = vmatprep.subr.mxu0 0.0
  %171 = vmatpush1.msra.mxu0 0.0
  %172 = vmatprep.subr.mxu0 0.0
  %173 = vmatpush1.msra.mxu0 0.0
  %174 = vmatprep.subr.mxu0 0.0
  %175 = vmatpush1.msra.mxu0 0.0
  %176 = vmatprep.subr.mxu0 0.0
  %177 = vmatpush1.msra.mxu0 0.0
  %178 = vmatprep.subr.mxu0 0.0
  %179 = vmatpush1.msra.mxu0 0.0
  %180 = vmatprep.subr.mxu0 0.0
  %181 = vmatpush1.msra.mxu0 0.0
  %182 = vmatprep.subr.mxu0 0.0
  %183 = vmatpush1.msra.mxu0 0.0
  %184 = vmatprep.subr.mxu0 0.0
  %185 = vmatpush1.msra.mxu0 0.0
  %186 = vmatprep.mubr.f32.mxu0 0.0
  %187 = vmatmul.mubr.f32.gmra.mrb[0].mxu0 %v120
  %v188 = vpop.f32.mrb[0].mxu0
  %v189 = vadd.f32 %v117, %v188
  %v190 = vpop.f32.mrb[0].mxu0
  %191 = vdwg.mxu0
  %v192 = vmax.f32 %v189, 0.0
  %v193 = vlaneseq
  %v194 = vshrl.u32 %v193, 7
  %v195 = vsub.s32 0, %v194
  %v196 = vrot.slane %v30, %v195
  %vm197 = vcmask 130048
  %v199 = vsel %vm197, %v192, 0
  %201 = vmatprep.subr.mxu0 0.0
  %202 = vmatpush1.msra.mxu0 %v26
  %203 = vmatprep.subr.mxu0 0.0
  %204 = vmatpush1.msra.mxu0 %v27
  %205 = vmatprep.subr.mxu0 0.0
  %206 = vmatpush1.msra.mxu0 0.0
  %207 = vmatprep.subr.mxu0 0.0
  %208 = vmatpush1.msra.mxu0 0.0
  %209 = vmatprep.subr.mxu0 0.0
  %210 = vmatpush1.msra.mxu0 0.0
  %211 = vmatprep.subr.mxu0 0.0
  %212 = vmatpush1.msra.mxu0 0.0
  %213 = vmatprep.subr.mxu0 0.0
  %214 = vmatpush1.msra.mxu0 0.0
  %215 = vmatprep.subr.mxu0 0.0
  %216 = vmatpush1.msra.mxu0 0.0
  %217 = vmatprep.subr.mxu0 0.0
  %218 = vmatpush1.msra.mxu0 0.0
  %219 = vmatprep.subr.mxu0 0.0
  %220 = vmatpush1.msra.mxu0 0.0
  %221 = vmatprep.subr.mxu0 0.0
  %222 = vmatpush1.msra.mxu0 0.0
  %223 = vmatprep.subr.mxu0 0.0
  %224 = vmatpush1.msra.mxu0 0.0
  %225 = vmatprep.subr.mxu0 0.0
  %226 = vmatpush1.msra.mxu0 0.0
  %227 = vmatprep.subr.mxu0 0.0
  %228 = vmatpush1.msra.mxu0 0.0
  %229 = vmatprep.subr.mxu0 0.0
  %230 = vmatpush1.msra.mxu0 0.0
  %231 = vmatprep.subr.mxu0 0.0
  %232 = vmatpush1.msra.mxu0 0.0
  %233 = vmatprep.subr.mxu0 0.0
  %234 = vmatpush1.msra.mxu0 0.0
  %235 = vmatprep.subr.mxu0 0.0
  %236 = vmatpush1.msra.mxu0 0.0
  %237 = vmatprep.subr.mxu0 0.0
  %238 = vmatpush1.msra.mxu0 0.0
  %239 = vmatprep.subr.mxu0 0.0
  %240 = vmatpush1.msra.mxu0 0.0
  %241 = vmatprep.subr.mxu0 0.0
  %242 = vmatpush1.msra.mxu0 0.0
  %243 = vmatprep.subr.mxu0 0.0
  %244 = vmatpush1.msra.mxu0 0.0
  %245 = vmatprep.subr.mxu0 0.0
  %246 = vmatpush1.msra.mxu0 0.0
  %247 = vmatprep.subr.mxu0 0.0
  %248 = vmatpush1.msra.mxu0 0.0
  %249 = vmatprep.subr.mxu0 0.0
  %250 = vmatpush1.msra.mxu0 0.0
  %251 = vmatprep.subr.mxu0 0.0
  %252 = vmatpush1.msra.mxu0 0.0
  %253 = vmatprep.subr.mxu0 0.0
  %254 = vmatpush1.msra.mxu0 0.0
  %255 = vmatprep.subr.mxu0 0.0
  %256 = vmatpush1.msra.mxu0 0.0
  %257 = vmatprep.subr.mxu0 0.0
  %258 = vmatpush1.msra.mxu0 0.0
  %259 = vmatprep.subr.mxu0 0.0
  %260 = vmatpush1.msra.mxu0 0.0
  %261 = vmatprep.subr.mxu0 0.0
  %262 = vmatpush1.msra.mxu0 0.0
  %263 = vmatprep.subr.mxu0 0.0
  %264 = vmatpush1.msra.mxu0 0.0
  %265 = vmatprep.mubr.f32.mxu0 0.0
  %266 = vmatmul.mubr.f32.gmra.mrb[0].mxu0 %v199
  %v267 = vpop.f32.mrb[0].mxu0
  %v268 = vadd.f32 %v196, %v267
  %v269 = vpop.f32.mrb[0].mxu0
  %270 = vdwg.mxu0
  %v271 = vlaneseq
  %v272 = vand.u32 %v271, 127
  %vm273 = vcmp.lt.s32.totalorder %v272, 9
  %v274 = vsel %vm273, %v268, -inf
  %v275 = vsel %vm197, %v274, -inf
  %276 = vmax.xlane.f32.xlu0 %v275
  %v277 = vpop.xlane.xlu0 %276
  %v278 = vsub.f32 %v268, %v277
  %v279 = vmul.f32 %v278, 1.442695
  %v280 = vpow.pop %v279
  %v281 = vsel %vm273, %v280, 0.0
  %v282 = vsel %vm197, %v281, 0.0
  %283 = vadd.xlane.f32.xlu0 %v282
  %v284 = vpop.xlane.xlu0 %283
  %v285 = vrcp.pop %v284
  %v286 = vmul.f32 %v281, %v285
  %v287 = vsel %vm273, %v286, %v268
  %288 = vst.msk [vmem:[%s3] sm:$0xff] %vm197, %v287
  // Predicated region
  $region14: #{tictactoe_forward.1} parent=0 // pred_check
    _
  $region15: #{tictactoe_forward.1} parent=0 // pred_check_branch
    %290 = sbr.rel (0) target = $region17
  $region16: #{tictactoe_forward.1} parent=0 // pred_region
    _
  $region17: #{tictactoe_forward.1} parent=0 // pred_fallthru
    _
  // Predicated region
  $region18: #{tictactoe_forward.1} parent=0 // pred_check
    _
  $region19: #{tictactoe_forward.1} parent=0 // pred_check_branch
    %292 = sbr.rel (0) target = $region21
  $region20: #{tictactoe_forward.1} parent=0 // pred_region
    _
  $region21: #{tictactoe_forward.1} parent=0 // pred_fallthru
    _

</llo_original>
